<compile_context>
chip_gen: v7x
topology: tpu7x:2x2x1
jax: 0.10.0
libtpu: 0.0.40
codegen_flags: <defaults>
</compile_context>

<pallas_src>
import functools
import numpy as np
import jax
import jax.numpy as jnp
from jax.experimental import pallas as pl
from jax.experimental.pallas import tpu as pltpu

BN_EPS = 1e-5


def _round_up(x, m):
    return ((x + m - 1) // m) * m


# --------------------------------------------------------------------------
# Kernel
# --------------------------------------------------------------------------
def _afn_kernel(embed_ref, lin_ref, lnnw_ref,
                w1_ref, b1_ref, w2_ref, b2_ref, wot_ref, bo_ref,
                out_ref, *, eup_dtype):
    """One batch tile of the AFN forward pass (eval mode, BN folded)."""
    cdt = lnnw_ref.dtype                                     # matmul operand dtype

    # ---- LNN: log transform (EUP), MXU contraction, expm1, relu ----
    ex = embed_ref[...].astype(eup_dtype)                     # (TB, F*E)
    # log1p(|x| + 1e-7) == log(|x| + (1 + 1e-7))
    xlog = jnp.log(jnp.abs(ex) + jnp.asarray(1.0 + 1e-7, eup_dtype))
    lnn = jnp.dot(xlog.astype(cdt), lnnw_ref[...],
                  preferred_element_type=jnp.float32)         # (TB, L*E)
    lnn = lnn.astype(eup_dtype)
    h = jnp.maximum(jnp.exp(lnn) - jnp.asarray(1.0, eup_dtype), 0).astype(cdt)

    # ---- MLP: [Linear(+folded eval BN) -> ReLU] x 2 (f32 accumulate) ----
    z = jnp.dot(h, w1_ref[...], preferred_element_type=jnp.float32) + b1_ref[...]
    h = jnp.maximum(z, 0.0).astype(cdt)
    z = jnp.dot(h, w2_ref[...], preferred_element_type=jnp.float32) + b2_ref[...]
    h = jnp.maximum(z, 0.0).astype(cdt)

    # ---- lane-dense output: (8, H) x (TB, H)^T -> (8, TB); row 0 is wo^T ----
    proj = jnp.einsum('oh,th->ot', wot_ref[...], h,
                      preferred_element_type=jnp.float32)     # (8, TB)
    mlp_out = proj[0:1, :]                                    # (1, TB)
    out_ref[0] = jax.nn.sigmoid(mlp_out + bo_ref[...] + lin_ref[0])


# --------------------------------------------------------------------------
# One-time parameter preparation (outside the per-step forward)
# --------------------------------------------------------------------------
def prepare_inference_params(params, *, embed_dim, compute_dtype=jnp.float32):
    """Fold eval-mode BatchNorm into the Linears and expand the LNN weight."""
    E = embed_dim
    # LNN contraction as one 2-D matmul: (B, F*E) @ (F*E, L*E)
    lnn_w_big = jnp.kron(params['lnn_w'].T, jnp.eye(E, dtype=jnp.float32))
    folded = {'lnn_w_big': lnn_w_big.astype(compute_dtype)}
    for k in ('1', '2'):
        scale = params['g' + k] * jax.lax.rsqrt(params['v' + k] + BN_EPS)  # (1, dout)
        folded['w' + k] = (params['w' + k] * scale).astype(compute_dtype)
        folded['b' + k] = ((params['b' + k] - params['m' + k]) * scale
                           + params['be' + k]).astype(jnp.float32)
    hidden = params['wo'].shape[0]
    # wo^T zero-padded to 8 rows -> sublane-aligned, lane-dense MXU output.
    wo_t8 = jnp.zeros((8, hidden), jnp.float32).at[0].set(params['wo'][:, 0])
    folded['wo_t'] = wo_t8.astype(compute_dtype)
    folded['bo'] = params['bo'].astype(jnp.float32)           # (1, 1)
    return folded


# --------------------------------------------------------------------------
# Forward wrapper
# --------------------------------------------------------------------------
def afn_forward(x_idx, params, folded, *, compute_dtype=jnp.float32,
                stream_dtype=None, eup_dtype=jnp.float32,
                tb=None, tb_cap=1024):
    """x_idx: int32 (B, num_fields).  Returns float32 (B,)."""
    if stream_dtype is None:
        stream_dtype = compute_dtype

    # ---- JAX glue: data-dependent embedding gathers + FeaturesLinear ----
    # TODO(synk): fuse this gather into the kernel to avoid the extra HBM
    #             round trip of materializing embed_flat.
    idx = x_idx + params['offsets'][None, :]                   # (B, F)
    embed_x = params['embedding'][idx]                         # (B, F, E)
    lin = (jnp.sum(params['linear_w'][idx], axis=1)
           + params['lin_b'][0, 0]).astype(jnp.float32)        # (B,)
    B, F, E = embed_x.shape
    FE = F * E
    embed_flat = embed_x.reshape(B, FE).astype(stream_dtype)

    # ---- batch tiling ----
    bf16_rows = (jnp.dtype(stream_dtype) == jnp.dtype(jnp.bfloat16)
                 or jnp.dtype(compute_dtype) == jnp.dtype(jnp.bfloat16))
    min_tb = 16 if bf16_rows else 8
    if tb is None:
        # >=2 grid steps when possible (feeds both v7x TensorCores), capped so
        # each step still streams a large, HBM-roofline-friendly tile.
        tb = min(tb_cap, max(min_tb, _round_up(pl.cdiv(B, 2), min_tb)))
    else:
        assert tb % min_tb == 0, f"tb must be a multiple of {min_tb}"
    n_tiles = pl.cdiv(B, tb)
    B_pad = n_tiles * tb
    if B_pad != B:
        embed_flat = jnp.pad(embed_flat, ((0, B_pad - B), (0, 0)))
        lin = jnp.pad(lin, ((0, B_pad - B),))
    lin = lin.reshape(n_tiles, 1, tb)                          # lane-dense blocks

    weights = [folded['lnn_w_big'],
               folded['w1'], folded['b1'],
               folded['w2'], folded['b2'],
               folded['wo_t'], folded['bo']]

    def full_spec(a):
        return pl.BlockSpec(a.shape, lambda i: (0,) * a.ndim)

    # Explicit scoped-VMEM budget: double-buffered streams + resident weights
    # + headroom for relayouts (v5e scoped default is only 16 MiB).
    stream_bytes = 2 * (tb * FE * jnp.dtype(stream_dtype).itemsize + 2 * tb * 4)
    weight_bytes = 2 * sum(w.size * w.dtype.itemsize for w in weights)
    vmem_limit = int(stream_bytes + weight_bytes) + (16 << 20)

    kernel = functools.partial(_afn_kernel, eup_dtype=eup_dtype)
    out = pl.pallas_call(
        kernel,
        out_shape=jax.ShapeDtypeStruct((n_tiles, 1, tb), jnp.float32),
        grid=(n_tiles,),
        in_specs=[pl.BlockSpec((tb, FE), lambda i: (i, 0)),
                  pl.BlockSpec((1, 1, tb), lambda i: (i, 0, 0))]
                 + [full_spec(w) for w in weights],
        out_specs=pl.BlockSpec((1, 1, tb), lambda i: (i, 0, 0)),
        compiler_params=pltpu.CompilerParams(
            dimension_semantics=("parallel",),
            vmem_limit_bytes=vmem_limit),
    )(embed_flat, lin, *weights)
    return out.reshape(B_pad)[:B]


# --------------------------------------------------------------------------
# Pure-JAX reference (un-folded BN, explicit (B, L, E) ordering)
# --------------------------------------------------------------------------
def afn_reference(x_idx, params):
    idx = x_idx + params['offsets'][None, :]
    ex = params['embedding'][idx]                              # (B, F, E)
    lin = jnp.sum(params['linear_w'][idx], axis=1, keepdims=True) + params['lin_b']
    xlog = jnp.log1p(jnp.abs(ex) + 1e-7)
    with jax.default_matmul_precision('highest'):
        lnn = jnp.einsum('bfe,lf->ble', xlog, params['lnn_w'])  # (B, L, E)
        h = jnp.maximum(jnp.expm1(lnn), 0.0).reshape(ex.shape[0], -1)
        for k in ('1', '2'):
            z = h @ params['w' + k] + params['b' + k]
            z = ((z - params['m' + k]) * jax.lax.rsqrt(params['v' + k] + BN_EPS)
                 * params['g' + k] + params['be' + k])
            h = jnp.maximum(z, 0.0)
        out = h @ params['wo'] + params['bo'] + lin
    return jax.nn.sigmoid(out[:, 0])


# --------------------------------------------------------------------------
# Parameter init
# --------------------------------------------------------------------------
def init_params(key, field_dims, embed_dim, lnn_dim, mlp_dims):
    num_fields = len(field_dims)
    vocab = int(sum(field_dims))
    lnn_out_dim = lnn_dim * embed_dim
    keys = jax.random.split(key, 4 + 6 * (len(mlp_dims) + 1))
    kit = iter(keys)

    def nrm(shape, scale=0.1):
        return scale * jax.random.normal(next(kit), shape, dtype=jnp.float32)

    params = {
        'offsets': jnp.asarray(
            np.array((0, *np.cumsum(field_dims)[:-1]), dtype=np.int32)),
        'embedding': nrm((vocab, embed_dim)),
        'linear_w': nrm((vocab,)),
        'lin_b': jnp.full((1, 1), 0.05, jnp.float32),
        'lnn_w': nrm((lnn_dim, num_fields)),
    }
    dims = (lnn_out_dim, *mlp_dims)
    for li, (din, dout) in enumerate(zip(dims[:-1], dims[1:]), start=1):
        params[f'w{li}'] = nrm((din, dout))
        params[f'b{li}'] = nrm((1, dout), 0.05)
        params[f'g{li}'] = 1.0 + nrm((1, dout), 0.1)
        params[f'be{li}'] = nrm((1, dout), 0.05)
        params[f'm{li}'] = nrm((1, dout), 0.05)
        params[f'v{li}'] = 1.0 + jnp.abs(nrm((1, dout), 0.1))
    params['wo'] = nrm((dims[-1], 1))
    params['bo'] = jnp.full((1, 1), 0.03, jnp.float32)
    return params


if __name__ == "__main__":
    # Module config (small, consistent with the forward pass):
    field_dims = (10, 20, 30, 40)      # num_fields = 4
    embed_dim = 16
    lnn_dim = 8                        # LNN_output_dim = 128
    mlp_dims = (64, 32)
    batch = 16

    key = jax.random.PRNGKey(0)
    pkey, xkey, xkey2 = jax.random.split(key, 3)
    params = init_params(pkey, field_dims, embed_dim, lnn_dim, mlp_dims)

    # x: Long tensor (batch, num_fields) — one categorical index per field.
    maxs = jnp.array(field_dims, dtype=jnp.int32)
    x = (jax.random.randint(xkey, (batch, len(field_dims)), 0, 1 << 30,
                            dtype=jnp.int32) % maxs[None, :]).astype(jnp.int32)
    y_ref = afn_reference(x, params)

    # ---- f32 path: two grid steps (tb = 8), lane-dense output ----
    folded_f32 = prepare_inference_params(params, embed_dim=embed_dim,
                                          compute_dtype=jnp.float32)
    y = jax.block_until_ready(afn_forward(x, params, folded_f32))
    assert y.shape == (batch,)
    assert jnp.allclose(y, y_ref, atol=1e-4, rtol=1e-4), (y, y_ref)

    # ---- f32 path with tail padding (non-multiple batch, explicit tb) ----
    x_tail = x[:13]
    y_tail = jax.block_until_ready(afn_forward(x_tail, params, folded_f32, tb=8))
    assert y_tail.shape == (13,)
    assert jnp.allclose(y_tail, y_ref[:13], atol=1e-4, rtol=1e-4)

    # ---- larger batch: multi-tile + padding path ----
    batch_big = 300
    x_big = (jax.random.randint(xkey2, (batch_big, len(field_dims)), 0, 1 << 30,
                                dtype=jnp.int32) % maxs[None, :]).astype(jnp.int32)
    y_big_ref = afn_reference(x_big, params)
    y_big = jax.block_until_ready(afn_forward(x_big, params, folded_f32))
    assert y_big.shape == (batch_big,)
    assert jnp.allclose(y_big, y_big_ref, atol=1e-4, rtol=1e-4)

    # ---- bf16 fast path: bf16 HBM stream + bf16 MXU operands, f32 accum ----
    folded_bf16 = prepare_inference_params(params, embed_dim=embed_dim,
                                           compute_dtype=jnp.bfloat16)
    y_bf16 = jax.block_until_ready(
        afn_forward(x, params, folded_bf16, compute_dtype=jnp.bfloat16,
                    stream_dtype=jnp.bfloat16))
    assert y_bf16.shape == (batch,)
    assert jnp.allclose(y_bf16, y_ref, atol=2e-2, rtol=0.0), (y_bf16, y_ref)

    # ---- bf16 HBM stream with f32 compute (v5e memory-bound win) ----
    y_mix = jax.block_until_ready(
        afn_forward(x, params, folded_f32, compute_dtype=jnp.float32,
                    stream_dtype=jnp.bfloat16))
    assert jnp.allclose(y_mix, y_ref, atol=2e-2, rtol=0.0)

    print("KERNEL_OK")
</pallas_src>

<mosaic_0001>
module attributes {stable_mosaic.version = 11 : i64} {
  func.func @_afn_kernel(%arg0: i32, %arg1: memref<8x64xf32, #tpu.memory_space<vmem>>, %arg2: memref<1x1x8xf32, #tpu.memory_space<vmem>>, %arg3: memref<64x128xf32, #tpu.memory_space<vmem>>, %arg4: memref<128x64xf32, #tpu.memory_space<vmem>>, %arg5: memref<1x64xf32, #tpu.memory_space<vmem>>, %arg6: memref<64x32xf32, #tpu.memory_space<vmem>>, %arg7: memref<1x32xf32, #tpu.memory_space<vmem>>, %arg8: memref<8x32xf32, #tpu.memory_space<vmem>>, %arg9: memref<1x1xf32, #tpu.memory_space<vmem>>, %arg10: memref<1x1x8xf32, #tpu.memory_space<vmem>>) attributes {dimension_semantics = [#tpu.dimension_semantics<parallel>], iteration_bounds = array<i64: 2>, scalar_prefetch = 0 : i64, scratch_operands = 0 : i64, tpu.core_type = #tpu.core_type<tc>, window_params = [{transform_indices = @transform_0, window_bounds = array<i64: 8, 64>}, {transform_indices = @transform_1, window_bounds = array<i64: 1, 1, 8>}, {pipeline_mode = #tpu.pipeline_mode<synchronous>, transform_indices = @transform_2, window_bounds = array<i64: 64, 128>}, {pipeline_mode = #tpu.pipeline_mode<synchronous>, transform_indices = @transform_3, window_bounds = array<i64: 128, 64>}, {pipeline_mode = #tpu.pipeline_mode<synchronous>, transform_indices = @transform_4, window_bounds = array<i64: 1, 64>}, {pipeline_mode = #tpu.pipeline_mode<synchronous>, transform_indices = @transform_5, window_bounds = array<i64: 64, 32>}, {pipeline_mode = #tpu.pipeline_mode<synchronous>, transform_indices = @transform_6, window_bounds = array<i64: 1, 32>}, {pipeline_mode = #tpu.pipeline_mode<synchronous>, transform_indices = @transform_7, window_bounds = array<i64: 8, 32>}, {pipeline_mode = #tpu.pipeline_mode<synchronous>, transform_indices = @transform_8, window_bounds = array<i64: 1, 1>}, {transform_indices = @transform_9, window_bounds = array<i64: 1, 1, 8>}]} {
    %c0 = arith.constant 0 : index
    %c0_0 = arith.constant 0 : index
    %0 = vector.load %arg1[%c0, %c0_0] : memref<8x64xf32, #tpu.memory_space<vmem>>, vector<8x64xf32>
    %1 = math.absf %0 : vector<8x64xf32>
    %cst = arith.constant 1.00000012 : f32
    %2 = vector.broadcast %cst : f32 to vector<8x64xf32>
    %3 = arith.addf %1, %2 : vector<8x64xf32>
    %4 = math.log %3 : vector<8x64xf32>
    %c0_1 = arith.constant 0 : index
    %c0_2 = arith.constant 0 : index
    %5 = vector.load %arg3[%c0_1, %c0_2] : memref<64x128xf32, #tpu.memory_space<vmem>>, vector<64x128xf32>
    %cst_3 = arith.constant dense<0.000000e+00> : vector<8x128xf32>
    %6 = tpu.matmul %4, %5, %cst_3 {dimension_numbers = #tpu.dot_dimension_numbers<[1], [0], [0], [1], [0, 0, 1, 1], [], []>} : vector<8x64xf32>, vector<64x128xf32>, vector<8x128xf32> -> vector<8x128xf32>
    %7 = math.exp %6 : vector<8x128xf32>
    %cst_4 = arith.constant 1.000000e+00 : f32
    %8 = vector.broadcast %cst_4 : f32 to vector<8x128xf32>
    %9 = arith.subf %7, %8 : vector<8x128xf32>
    %cst_5 = arith.constant 0.000000e+00 : f32
    %10 = vector.broadcast %cst_5 : f32 to vector<8x128xf32>
    %11 = arith.maximumf %9, %10 : vector<8x128xf32>
    %c0_6 = arith.constant 0 : index
    %c0_7 = arith.constant 0 : index
    %12 = vector.load %arg4[%c0_6, %c0_7] : memref<128x64xf32, #tpu.memory_space<vmem>>, vector<128x64xf32>
    %cst_8 = arith.constant dense<0.000000e+00> : vector<8x64xf32>
    %13 = tpu.matmul %11, %12, %cst_8 {dimension_numbers = #tpu.dot_dimension_numbers<[1], [0], [0], [1], [0, 0, 1, 1], [], []>} : vector<8x128xf32>, vector<128x64xf32>, vector<8x64xf32> -> vector<8x64xf32>
    %c0_9 = arith.constant 0 : index
    %c0_10 = arith.constant 0 : index
    %14 = vector.load %arg5[%c0_9, %c0_10] : memref<1x64xf32, #tpu.memory_space<vmem>>, vector<1x64xf32>
    %15 = vector.broadcast %14 : vector<1x64xf32> to vector<8x64xf32>
    %16 = arith.addf %13, %15 : vector<8x64xf32>
    %cst_11 = arith.constant 0.000000e+00 : f32
    %17 = vector.broadcast %cst_11 : f32 to vector<8x64xf32>
    %18 = arith.maximumf %16, %17 : vector<8x64xf32>
    %c0_12 = arith.constant 0 : index
    %c0_13 = arith.constant 0 : index
    %19 = vector.load %arg6[%c0_12, %c0_13] : memref<64x32xf32, #tpu.memory_space<vmem>>, vector<64x32xf32>
    %cst_14 = arith.constant dense<0.000000e+00> : vector<8x32xf32>
    %20 = tpu.matmul %18, %19, %cst_14 {dimension_numbers = #tpu.dot_dimension_numbers<[1], [0], [0], [1], [0, 0, 1, 1], [], []>} : vector<8x64xf32>, vector<64x32xf32>, vector<8x32xf32> -> vector<8x32xf32>
    %c0_15 = arith.constant 0 : index
    %c0_16 = arith.constant 0 : index
    %21 = vector.load %arg7[%c0_15, %c0_16] : memref<1x32xf32, #tpu.memory_space<vmem>>, vector<1x32xf32>
    %22 = vector.broadcast %21 : vector<1x32xf32> to vector<8x32xf32>
    %23 = arith.addf %20, %22 : vector<8x32xf32>
    %cst_17 = arith.constant 0.000000e+00 : f32
    %24 = vector.broadcast %cst_17 : f32 to vector<8x32xf32>
    %25 = arith.maximumf %23, %24 : vector<8x32xf32>
    %c0_18 = arith.constant 0 : index
    %c0_19 = arith.constant 0 : index
    %26 = vector.load %arg8[%c0_18, %c0_19] : memref<8x32xf32, #tpu.memory_space<vmem>>, vector<8x32xf32>
    "tpu.trace_start"() <{level = 10 : i32, message = "oh,th->ot"}> : () -> ()
    %cst_20 = arith.constant dense<0.000000e+00> : vector<8x8xf32>
    %27 = tpu.matmul %26, %25, %cst_20 {dimension_numbers = #tpu.dot_dimension_numbers<[1], [1], [0], [0], [0, 0, 1, 0], [], []>} : vector<8x32xf32>, vector<8x32xf32>, vector<8x8xf32> -> vector<8x8xf32>
    "tpu.trace_stop"() : () -> ()
    %28 = vector.extract_strided_slice %27 {offsets = [0, 0], sizes = [1, 8], strides = [1, 1]} : vector<8x8xf32> to vector<1x8xf32>
    %c0_21 = arith.constant 0 : index
    %c0_22 = arith.constant 0 : index
    %29 = vector.load %arg9[%c0_21, %c0_22] : memref<1x1xf32, #tpu.memory_space<vmem>>, vector<1x1xf32>
    %30 = vector.broadcast %29 : vector<1x1xf32> to vector<1x8xf32>
    %31 = arith.addf %28, %30 : vector<1x8xf32>
    %c0_23 = arith.constant 0 : index
    %c0_24 = arith.constant 0 : index
    %c0_25 = arith.constant 0 : index
    %32 = vector.load %arg2[%c0_23, %c0_24, %c0_25] : memref<1x1x8xf32, #tpu.memory_space<vmem>>, vector<1x1x8xf32>
    %33 = vector.shape_cast %32 : vector<1x1x8xf32> to vector<1x8xf32>
    %34 = arith.addf %31, %33 : vector<1x8xf32>
    %35 = arith.negf %34 : vector<1x8xf32>
    %36 = math.exp %35 : vector<1x8xf32>
    %cst_26 = arith.constant 1.000000e+00 : f32
    %37 = vector.broadcast %cst_26 : f32 to vector<1x8xf32>
    %38 = arith.addf %37, %36 : vector<1x8xf32>
    %39 = arith.divf %37, %38 : vector<1x8xf32>
    %c0_27 = arith.constant 0 : index
    %c0_28 = arith.constant 0 : index
    %c0_29 = arith.constant 0 : index
    %40 = vector.load %arg10[%c0_27, %c0_28, %c0_29] : memref<1x1x8xf32, #tpu.memory_space<vmem>>, vector<1x1x8xf32>
    %41 = vector.shape_cast %40 : vector<1x1x8xf32> to vector<1x8xf32>
    %42 = vector.shape_cast %39 : vector<1x8xf32> to vector<1x1x8xf32>
    tpu.vector_store %arg10[%c0_27, %c0_28, %c0_29], %42 {strides = array<i32>} : memref<1x1x8xf32, #tpu.memory_space<vmem>>, vector<1x1x8xf32>,
    return
  }
  func.func @transform_0(%arg0: i32) -> (i32, i32) {
    %c0_i32 = arith.constant 0 : i32
    %c0_i32_0 = arith.constant 0 : i32
    return %arg0, %c0_i32 : i32, i32
  }
  func.func @transform_1(%arg0: i32) -> (i32, i32, i32) {
    %c0_i32 = arith.constant 0 : i32
    %c0_i32_0 = arith.constant 0 : i32
    %c0_i32_1 = arith.constant 0 : i32
    return %arg0, %c0_i32, %c0_i32_0 : i32, i32, i32
  }
  func.func @transform_2(%arg0: i32) -> (i32, i32) {
    %c0_i32 = arith.constant 0 : i32
    %c0_i32_0 = arith.constant 0 : i32
    %c0_i32_1 = arith.constant 0 : i32
    return %c0_i32, %c0_i32_0 : i32, i32
  }
  func.func @transform_3(%arg0: i32) -> (i32, i32) {
    %c0_i32 = arith.constant 0 : i32
    %c0_i32_0 = arith.constant 0 : i32
    %c0_i32_1 = arith.constant 0 : i32
    return %c0_i32, %c0_i32_0 : i32, i32
  }
  func.func @transform_4(%arg0: i32) -> (i32, i32) {
    %c0_i32 = arith.constant 0 : i32
    %c0_i32_0 = arith.constant 0 : i32
    %c0_i32_1 = arith.constant 0 : i32
    return %c0_i32, %c0_i32_0 : i32, i32
  }
  func.func @transform_5(%arg0: i32) -> (i32, i32) {
    %c0_i32 = arith.constant 0 : i32
    %c0_i32_0 = arith.constant 0 : i32
    %c0_i32_1 = arith.constant 0 : i32
    return %c0_i32, %c0_i32_0 : i32, i32
  }
  func.func @transform_6(%arg0: i32) -> (i32, i32) {
    %c0_i32 = arith.constant 0 : i32
    %c0_i32_0 = arith.constant 0 : i32
    %c0_i32_1 = arith.constant 0 : i32
    return %c0_i32, %c0_i32_0 : i32, i32
  }
  func.func @transform_7(%arg0: i32) -> (i32, i32) {
    %c0_i32 = arith.constant 0 : i32
    %c0_i32_0 = arith.constant 0 : i32
    %c0_i32_1 = arith.constant 0 : i32
    return %c0_i32, %c0_i32_0 : i32, i32
  }
  func.func @transform_8(%arg0: i32) -> (i32, i32) {
    %c0_i32 = arith.constant 0 : i32
    %c0_i32_0 = arith.constant 0 : i32
    %c0_i32_1 = arith.constant 0 : i32
    return %c0_i32, %c0_i32_0 : i32, i32
  }
  func.func @transform_9(%arg0: i32) -> (i32, i32, i32) {
    %c0_i32 = arith.constant 0 : i32
    %c0_i32_0 = arith.constant 0 : i32
    %c0_i32_1 = arith.constant 0 : i32
    return %arg0, %c0_i32, %c0_i32_0 : i32, i32, i32
  }
}

</mosaic_0001>

<llo_original>
// kernel: tpu_custom_call.1
$region0: #{tpu_custom_call.1}
  #allocation0 [shape = 'u32[]', space=smem, size = 0x4, offset = 0x4, fixed_abs, tag = 'smem constant byte address 0x4 - core index']
  #allocation1 [shape = 'u32[144,128]{1,0:T(1,128)}', space=vmem, size = 0x12000, scoped, tag = 'internal scratch']
  #allocation2 [shape = 'f32[1,1]{1,0:T(1,128)S(1)}', space=vmem, size = 0x200, scoped, tag = 'scoped memory for tpu_custom_call.1']
  %s0 = inlined_call_operand.vmem [shape: f32[16,64], index: 0, kind: input, shape index: {}]
  %s1 = inlined_call_operand.vmem [shape: f32[2,1,8], index: 1, kind: input, shape index: {}]
  %s2 = inlined_call_operand.vmem [shape: f32[64,128], index: 2, kind: input, shape index: {}]
  %s3 = inlined_call_operand.vmem [shape: f32[128,64], index: 3, kind: input, shape index: {}]
  %s4 = inlined_call_operand.vmem [shape: f32[1,64], index: 4, kind: input, shape index: {}]
  %s5 = inlined_call_operand.vmem [shape: f32[64,32], index: 5, kind: input, shape index: {}]
  %s6 = inlined_call_operand.vmem [shape: f32[1,32], index: 6, kind: input, shape index: {}]
  %s7 = inlined_call_operand.vmem [shape: f32[8,32], index: 7, kind: input, shape index: {}]
  %s8 = inlined_call_operand.<no memory space> [shape: f32[1,1], index: 8, kind: input, shape index: {}]
  %s9 = inlined_call_operand.hbm [shape: f32[2,1,8], index: 9, kind: output, shape index: {}]
  %s10 = sld [smem:[#allocation0]]
  $region69: #{tpu_custom_call.1} parent=0
    _
  %s12 = ssub.s32 1, %s10
  %s13 = scalar_select 0, %s12, %s10
  %v14 = vstv %s8
  %15 = vst [vmem:[#allocation2] sm:$0x1] %v14
  $region1: #{tpu_custom_call.1} parent=0
    #allocation3 [shape = 'u8[1024]{0}', space=vmem, size = 0x400, scoped, tag = 'output window, operand 0']
    #allocation4 [shape = 's32[2]{0}', space=sflag, size = 0x8, scoped, tag = 'scoped memory for tpu_custom_call.1']
    %16 = vsyncpa [#allocation4], 0
    %s17 = scalar_lea.sflag [#allocation4], 1
    %18 = vsyncpa %s17, 0
    loop: start=0, step=1, limit=4
    $region2: #{tpu_custom_call.1} parent=1 // loop_pre_header
      _
    $region3: #{tpu_custom_call.1} parent=1 // loop_header
      %s20 = sphi 0, %s24
      %p21 = scmp.ge.s32.totalorder %s20, 4
      %s30 = sphi 0, %s32
      %s33 = sphi 0, %s30
      %s34 = sphi 0, %s33
      %s50 = sphi 0, %s34
      %s56 = sphi 0, %s58
      %s59 = sphi 0, %s56
      %s60 = sphi 0, %s59
      %s76 = sphi 0, %s60
      %s80 = sphi 0, %s80
      %s82 = sphi 0, %s80
      %s83 = sphi 0, %s82
      %s97 = sphi 0, %s83
      %s101 = sphi 0, %s101
      %s103 = sphi 0, %s101
      %s104 = sphi 0, %s103
      %s118 = sphi 0, %s104
      %s122 = sphi 0, %s122
      %s124 = sphi 0, %s122
      %s125 = sphi 0, %s124
      %s139 = sphi 0, %s125
      %s143 = sphi 0, %s143
      %s145 = sphi 0, %s143
      %s146 = sphi 0, %s145
      %s160 = sphi 0, %s146
      %s164 = sphi 0, %s164
      %s166 = sphi 0, %s164
      %s167 = sphi 0, %s166
      %s181 = sphi 0, %s167
      %s185 = sphi 0, %s185
      %s187 = sphi 0, %s185
      %s188 = sphi 0, %s187
      %s202 = sphi 0, %s188
      %s206 = sphi 0, %s206
      %s208 = sphi 0, %s206
      %s209 = sphi 0, %s208
      %s223 = sphi 0, %s209
      %s229 = sphi 0, %s231
      %s232 = sphi 0, %s229
      %s233 = sphi 0, %s232
      %s249 = sphi 0, %s233
    $region4: #{tpu_custom_call.1} parent=1 // loop_header_branch
      %23 = sbr.rel (%p21) target = $region8
    $region5: #{tpu_custom_call.1} parent=1 // loop_body
      %s25 = ssub.s32 %s20, 1
      %s26 = ssub.s32 %s20, 2
      %s27 = sadd.s32 %s20, 1
      %s28 = ssub.s32 %s20, %s27
      %p29 = scmp.eq.s32.totalorder %s28, 0
      %s31 = sadd.s32 %s30, 1
      %s32 = scalar_select %p29, %s30, %s31
      %p35 = pneg %p29
      %p36 = scmp.eq.s32.totalorder %s20, 1
      %p37 = por %p35, %p36
      %p38 = scmp.ne.s32.totalorder %s30, %s33
      %p39 = scmp.eq.s32.totalorder %s20, 0
      %p40 = por %p38, %p39
      %p41 = scmp.ne.s32.totalorder %s30, %s33
      %p42 = scmp.eq.s32.totalorder %s25, 1
      %p43 = por %p41, %p42
      %p44 = scmp.ne.s32.totalorder %s33, %s34
      %p45 = scmp.eq.s32.totalorder %s25, 0
      %p46 = por %p44, %p45
      %p47 = scmp.ne.s32.totalorder %s33, %s34
      %p48 = scmp.eq.s32.totalorder %s26, 1
      %p49 = por %p47, %p48
      %p51 = scmp.ne.s32.totalorder %s34, %s50
      %p52 = scmp.eq.s32.totalorder %s26, 0
      %p53 = por %p51, %p52
      %s54 = ssub.s32 %s20, %s27
      %p55 = scmp.eq.s32.totalorder %s54, 0
      %s57 = sadd.s32 %s56, 1
      %s58 = scalar_select %p55, %s56, %s57
      %p61 = pneg %p55
      %p62 = scmp.eq.s32.totalorder %s20, 1
      %p63 = por %p61, %p62
      %p64 = scmp.ne.s32.totalorder %s56, %s59
      %p65 = scmp.eq.s32.totalorder %s20, 0
      %p66 = por %p64, %p65
      %p67 = scmp.ne.s32.totalorder %s56, %s59
      %p68 = scmp.eq.s32.totalorder %s25, 1
      %p69 = por %p67, %p68
      %p70 = scmp.ne.s32.totalorder %s59, %s60
      %p71 = scmp.eq.s32.totalorder %s25, 0
      %p72 = por %p70, %p71
      %p73 = scmp.ne.s32.totalorder %s59, %s60
      %p74 = scmp.eq.s32.totalorder %s26, 1
      %p75 = por %p73, %p74
      %p77 = scmp.ne.s32.totalorder %s60, %s76
      %p78 = scmp.eq.s32.totalorder %s26, 0
      %p79 = por %p77, %p78
      %s81 = sadd.s32 %s80, 1
      %p84 = scmp.eq.s32.totalorder %s20, 1
      %p85 = scmp.ne.s32.totalorder %s80, %s82
      %p86 = scmp.eq.s32.totalorder %s20, 0
      %p87 = por %p85, %p86
      %p88 = scmp.ne.s32.totalorder %s80, %s82
      %p89 = scmp.eq.s32.totalorder %s25, 1
      %p90 = por %p88, %p89
      %p91 = scmp.ne.s32.totalorder %s82, %s83
      %p92 = scmp.eq.s32.totalorder %s25, 0
      %p93 = por %p91, %p92
      %p94 = scmp.ne.s32.totalorder %s82, %s83
      %p95 = scmp.eq.s32.totalorder %s26, 1
      %p96 = por %p94, %p95
      %p98 = scmp.ne.s32.totalorder %s83, %s97
      %p99 = scmp.eq.s32.totalorder %s26, 0
      %p100 = por %p98, %p99
      %s102 = sadd.s32 %s101, 1
      %p105 = scmp.eq.s32.totalorder %s20, 1
      %p106 = scmp.ne.s32.totalorder %s101, %s103
      %p107 = scmp.eq.s32.totalorder %s20, 0
      %p108 = por %p106, %p107
      %p109 = scmp.ne.s32.totalorder %s101, %s103
      %p110 = scmp.eq.s32.totalorder %s25, 1
      %p111 = por %p109, %p110
      %p112 = scmp.ne.s32.totalorder %s103, %s104
      %p113 = scmp.eq.s32.totalorder %s25, 0
      %p114 = por %p112, %p113
      %p115 = scmp.ne.s32.totalorder %s103, %s104
      %p116 = scmp.eq.s32.totalorder %s26, 1
      %p117 = por %p115, %p116
      %p119 = scmp.ne.s32.totalorder %s104, %s118
      %p120 = scmp.eq.s32.totalorder %s26, 0
      %p121 = por %p119, %p120
      %s123 = sadd.s32 %s122, 1
      %p126 = scmp.eq.s32.totalorder %s20, 1
      %p127 = scmp.ne.s32.totalorder %s122, %s124
      %p128 = scmp.eq.s32.totalorder %s20, 0
      %p129 = por %p127, %p128
      %p130 = scmp.ne.s32.totalorder %s122, %s124
      %p131 = scmp.eq.s32.totalorder %s25, 1
      %p132 = por %p130, %p131
      %p133 = scmp.ne.s32.totalorder %s124, %s125
      %p134 = scmp.eq.s32.totalorder %s25, 0
      %p135 = por %p133, %p134
      %p136 = scmp.ne.s32.totalorder %s124, %s125
      %p137 = scmp.eq.s32.totalorder %s26, 1
      %p138 = por %p136, %p137
      %p140 = scmp.ne.s32.totalorder %s125, %s139
      %p141 = scmp.eq.s32.totalorder %s26, 0
      %p142 = por %p140, %p141
      %s144 = sadd.s32 %s143, 1
      %p147 = scmp.eq.s32.totalorder %s20, 1
      %p148 = scmp.ne.s32.totalorder %s143, %s145
      %p149 = scmp.eq.s32.totalorder %s20, 0
      %p150 = por %p148, %p149
      %p151 = scmp.ne.s32.totalorder %s143, %s145
      %p152 = scmp.eq.s32.totalorder %s25, 1
      %p153 = por %p151, %p152
      %p154 = scmp.ne.s32.totalorder %s145, %s146
      %p155 = scmp.eq.s32.totalorder %s25, 0
      %p156 = por %p154, %p155
      %p157 = scmp.ne.s32.totalorder %s145, %s146
      %p158 = scmp.eq.s32.totalorder %s26, 1
      %p159 = por %p157, %p158
      %p161 = scmp.ne.s32.totalorder %s146, %s160
      %p162 = scmp.eq.s32.totalorder %s26, 0
      %p163 = por %p161, %p162
      %s165 = sadd.s32 %s164, 1
      %p168 = scmp.eq.s32.totalorder %s20, 1
      %p169 = scmp.ne.s32.totalorder %s164, %s166
      %p170 = scmp.eq.s32.totalorder %s20, 0
      %p171 = por %p169, %p170
      %p172 = scmp.ne.s32.totalorder %s164, %s166
      %p173 = scmp.eq.s32.totalorder %s25, 1
      %p174 = por %p172, %p173
      %p175 = scmp.ne.s32.totalorder %s166, %s167
      %p176 = scmp.eq.s32.totalorder %s25, 0
      %p177 = por %p175, %p176
      %p178 = scmp.ne.s32.totalorder %s166, %s167
      %p179 = scmp.eq.s32.totalorder %s26, 1
      %p180 = por %p178, %p179
      %p182 = scmp.ne.s32.totalorder %s167, %s181
      %p183 = scmp.eq.s32.totalorder %s26, 0
      %p184 = por %p182, %p183
      %s186 = sadd.s32 %s185, 1
      %p189 = scmp.eq.s32.totalorder %s20, 1
      %p190 = scmp.ne.s32.totalorder %s185, %s187
      %p191 = scmp.eq.s32.totalorder %s20, 0
      %p192 = por %p190, %p191
      %p193 = scmp.ne.s32.totalorder %s185, %s187
      %p194 = scmp.eq.s32.totalorder %s25, 1
      %p195 = por %p193, %p194
      %p196 = scmp.ne.s32.totalorder %s187, %s188
      %p197 = scmp.eq.s32.totalorder %s25, 0
      %p198 = por %p196, %p197
      %p199 = scmp.ne.s32.totalorder %s187, %s188
      %p200 = scmp.eq.s32.totalorder %s26, 1
      %p201 = por %p199, %p200
      %p203 = scmp.ne.s32.totalorder %s188, %s202
      %p204 = scmp.eq.s32.totalorder %s26, 0
      %p205 = por %p203, %p204
      %s207 = sadd.s32 %s206, 1
      %p210 = scmp.eq.s32.totalorder %s20, 1
      %p211 = scmp.ne.s32.totalorder %s206, %s208
      %p212 = scmp.eq.s32.totalorder %s20, 0
      %p213 = por %p211, %p212
      %p214 = scmp.ne.s32.totalorder %s206, %s208
      %p215 = scmp.eq.s32.totalorder %s25, 1
      %p216 = por %p214, %p215
      %p217 = scmp.ne.s32.totalorder %s208, %s209
      %p218 = scmp.eq.s32.totalorder %s25, 0
      %p219 = por %p217, %p218
      %p220 = scmp.ne.s32.totalorder %s208, %s209
      %p221 = scmp.eq.s32.totalorder %s26, 1
      %p222 = por %p220, %p221
      %p224 = scmp.ne.s32.totalorder %s209, %s223
      %p225 = scmp.eq.s32.totalorder %s26, 0
      %p226 = por %p224, %p225
      %s227 = ssub.s32 %s20, %s27
      %p228 = scmp.eq.s32.totalorder %s227, 0
      %s230 = sadd.s32 %s229, 1
      %s231 = scalar_select %p228, %s229, %s230
      %p234 = pneg %p228
      %p235 = scmp.eq.s32.totalorder %s20, 1
      %p236 = por %p234, %p235
      %p237 = scmp.ne.s32.totalorder %s229, %s232
      %p238 = scmp.eq.s32.totalorder %s20, 0
      %p239 = por %p237, %p238
      %p240 = scmp.ne.s32.totalorder %s229, %s232
      %p241 = scmp.eq.s32.totalorder %s25, 1
      %p242 = por %p240, %p241
      %p243 = scmp.ne.s32.totalorder %s232, %s233
      %p244 = scmp.eq.s32.totalorder %s25, 0
      %p245 = por %p243, %p244
      %p246 = scmp.ne.s32.totalorder %s232, %s233
      %p247 = scmp.eq.s32.totalorder %s26, 1
      %p248 = por %p246, %p247
      %p250 = scmp.ne.s32.totalorder %s233, %s249
      %p251 = scmp.eq.s32.totalorder %s26, 0
      %p252 = por %p250, %p251
      %p253 = scmp.le.s32.totalorder 1, %s20
      %p254 = scmp.lt.s32.totalorder %s20, 3
      %p255 = pnand %p253, %p254
      %p256 = pneg %p255
      // Predicated region
      $region9: #{tpu_custom_call.1} parent=5 // pred_check
        _
      $region10: #{tpu_custom_call.1} parent=5 // pred_check_branch
        %258 = sbr.rel (%p255) target = $region12
      $region11: #{tpu_custom_call.1} parent=5 // pred_region
        %s259 = ssub.s32 %s20, 1
        // Predicated region
        $region13: #{tpu_custom_call.1} parent=11 // pred_check
          %p260 = pneg %p93
        $region14: #{tpu_custom_call.1} parent=11 // pred_check_branch
          %262 = sbr.rel (%p260) target = $region16
        $region15: #{tpu_custom_call.1} parent=11 // pred_region
          _
        $region16: #{tpu_custom_call.1} parent=11 // pred_fallthru
          _
        // Predicated region
        $region17: #{tpu_custom_call.1} parent=11 // pred_check
          %p263 = pneg %p114
        $region18: #{tpu_custom_call.1} parent=11 // pred_check_branch
          %265 = sbr.rel (%p263) target = $region20
        $region19: #{tpu_custom_call.1} parent=11 // pred_region
          _
        $region20: #{tpu_custom_call.1} parent=11 // pred_fallthru
          _
        // Predicated region
        $region21: #{tpu_custom_call.1} parent=11 // pred_check
          %p266 = pneg %p135
        $region22: #{tpu_custom_call.1} parent=11 // pred_check_branch
          %268 = sbr.rel (%p266) target = $region24
        $region23: #{tpu_custom_call.1} parent=11 // pred_region
          _
        $region24: #{tpu_custom_call.1} parent=11 // pred_fallthru
          _
        // Predicated region
        $region25: #{tpu_custom_call.1} parent=11 // pred_check
          %p269 = pneg %p156
        $region26: #{tpu_custom_call.1} parent=11 // pred_check_branch
          %271 = sbr.rel (%p269) target = $region28
        $region27: #{tpu_custom_call.1} parent=11 // pred_region
          _
        $region28: #{tpu_custom_call.1} parent=11 // pred_fallthru
          _
        // Predicated region
        $region29: #{tpu_custom_call.1} parent=11 // pred_check
          %p272 = pneg %p177
        $region30: #{tpu_custom_call.1} parent=11 // pred_check_branch
          %274 = sbr.rel (%p272) target = $region32
        $region31: #{tpu_custom_call.1} parent=11 // pred_region
          _
        $region32: #{tpu_custom_call.1} parent=11 // pred_fallthru
          _
        // Predicated region
        $region33: #{tpu_custom_call.1} parent=11 // pred_check
          %p275 = pneg %p198
        $region34: #{tpu_custom_call.1} parent=11 // pred_check_branch
          %277 = sbr.rel (%p275) target = $region36
        $region35: #{tpu_custom_call.1} parent=11 // pred_region
          _
        $region36: #{tpu_custom_call.1} parent=11 // pred_fallthru
          _
        // Predicated region
        $region37: #{tpu_custom_call.1} parent=11 // pred_check
          %p278 = pneg %p219
        $region38: #{tpu_custom_call.1} parent=11 // pred_check_branch
          %280 = sbr.rel (%p278) target = $region40
        $region39: #{tpu_custom_call.1} parent=11 // pred_region
          _
        $region40: #{tpu_custom_call.1} parent=11 // pred_fallthru
          _
      $region12: #{tpu_custom_call.1} parent=5 // pred_fallthru
        _
      %p281 = scmp.lt.s32.totalorder %s20, 2
      // Predicated region
      $region41: #{tpu_custom_call.1} parent=5 // pred_check
        %p282 = pneg %p281
      $region42: #{tpu_custom_call.1} parent=5 // pred_check_branch
        %284 = sbr.rel (%p282) target = $region44
      $region43: #{tpu_custom_call.1} parent=5 // pred_region
        // Predicated region
        $region45: #{tpu_custom_call.1} parent=43 // pred_check
          %p285 = pneg %p40
        $region46: #{tpu_custom_call.1} parent=43 // pred_check_branch
          %287 = sbr.rel (%p285) target = $region48
        $region47: #{tpu_custom_call.1} parent=43 // pred_region
          %p288 = scmp.lt.s32.totalorder %s20, 1
          %s289 = scalar_select %p288, %s20, 1
          %s290 = smul.addr %s289, 8
          %s291 = scalar_lea.vmem %s0, %s290
        $region48: #{tpu_custom_call.1} parent=43 // pred_fallthru
          _
        // Predicated region
        $region49: #{tpu_custom_call.1} parent=43 // pred_check
          %p292 = pneg %p66
        $region50: #{tpu_custom_call.1} parent=43 // pred_check_branch
          %294 = sbr.rel (%p292) target = $region52
        $region51: #{tpu_custom_call.1} parent=43 // pred_region
          %p295 = scmp.lt.s32.totalorder %s20, 1
          %s296 = scalar_select %p295, %s20, 1
          %s297 = scalar_lea.vmem %s1, %s296
        $region52: #{tpu_custom_call.1} parent=43 // pred_fallthru
          _
      $region44: #{tpu_custom_call.1} parent=5 // pred_fallthru
        _
      %p298 = scmp.le.s32.totalorder 1, %s20
      %p299 = scmp.lt.s32.totalorder %s20, 3
      %p300 = pnand %p298, %p299
      %p301 = pneg %p300
      // Predicated region
      $region53: #{tpu_custom_call.1} parent=5 // pred_check
        _
      $region54: #{tpu_custom_call.1} parent=5 // pred_check_branch
        %303 = sbr.rel (%p300) target = $region56
      $region55: #{tpu_custom_call.1} parent=5 // pred_region
        %s304 = ssub.s32 %s20, 1
        %p305 = scmp.lt.s32.totalorder %s25, 1
        %s306 = scalar_select %p305, %s25, 1
        %s307 = smul.addr %s306, 8
        %s308 = scalar_lea.vmem %s0, %s307
        %p309 = pneg %p46
        %p310 = pneg %p43
        %p311 = scmp.lt.s32.totalorder %s25, 1
        %s312 = scalar_select %p311, %s25, 1
        %s313 = scalar_lea.vmem %s1, %s312
        %p314 = pneg %p72
        %p315 = pneg %p69
        %p316 = pneg %p93
        %p317 = pneg %p90
        %p318 = pneg %p114
        %p319 = pneg %p111
        %p320 = pneg %p135
        %p321 = pneg %p132
        %p322 = pneg %p156
        %p323 = pneg %p153
        %p324 = pneg %p177
        %p325 = pneg %p174
        %p326 = pneg %p198
        %p327 = pneg %p195
        %p328 = pneg %p219
        %p329 = pneg %p216
        %p330 = pneg %p245
        %p331 = pneg %p242
        %s332 = sand.u32 %s232, 1
        %s333 = scalar_lea.sflag [#allocation4], %s332
        %s334 = sand.u32 %s232, 1
        %s335 = scalar_lea.vmem [#allocation3], %s334
        %p336 = scmp.lt.s32.totalorder %s25, 1
        %s337 = scalar_select %p336, %s25, 1
        %s338 = smul.addr %s337, 8
        %s339 = scalar_lea.vmem %s0, %s338
        %p340 = scmp.lt.s32.totalorder %s25, 1
        %s341 = scalar_select %p340, %s25, 1
        %s342 = scalar_lea.vmem %s1, %s341
        %v343 = vld [vmem:[%s339] sm:$0xff]
        %v344 = vand.u32 2147483647, %v343
        %v345 = vadd.f32 %v344, 1.0000001
        %v346 = vlog2.pop %v345
        %v347 = vmul.f32 %v346, 0.6931472
        %v348 = vld [vmem:[%s2] sm:$0xff]
        %v349 = vld [vmem:[%s2 + $0x8] sm:$0xff]
        %v350 = vld [vmem:[%s2 + $0x10] sm:$0xff]
        %v351 = vld [vmem:[%s2 + $0x18] sm:$0xff]
        %v352 = vld [vmem:[%s2 + $0x20] sm:$0xff]
        %v353 = vld [vmem:[%s2 + $0x28] sm:$0xff]
        %v354 = vld [vmem:[%s2 + $0x30] sm:$0xff]
        %v355 = vld [vmem:[%s2 + $0x38] sm:$0xff]
        %vm356 = vcmask 523264
        %v358 = vsel %vm356, %v347, 0
        %360 = vmatprep.subr.mxu0 0.0
        %361 = vmatpush1.msra.mxu0 %v348
        %362 = vmatprep.subr.mxu0 0.0
        %363 = vmatpush1.msra.mxu0 %v349
        %364 = vmatprep.subr.mxu0 0.0
        %365 = vmatpush1.msra.mxu0 %v350
        %366 = vmatprep.subr.mxu0 0.0
        %367 = vmatpush1.msra.mxu0 %v351
        %368 = vmatprep.subr.mxu0 0.0
        %369 = vmatpush1.msra.mxu0 %v352
        %370 = vmatprep.subr.mxu0 0.0
        %371 = vmatpush1.msra.mxu0 %v353
        %372 = vmatprep.subr.mxu0 0.0
        %373 = vmatpush1.msra.mxu0 %v354
        %374 = vmatprep.subr.mxu0 0.0
        %375 = vmatpush1.msra.mxu0 %v355
        %376 = vmatprep.subr.mxu0 0.0
        %377 = vmatpush1.msra.mxu0 0.0
        %378 = vmatprep.subr.mxu0 0.0
        %379 = vmatpush1.msra.mxu0 0.0
        %380 = vmatprep.subr.mxu0 0.0
        %381 = vmatpush1.msra.mxu0 0.0
        %382 = vmatprep.subr.mxu0 0.0
        %383 = vmatpush1.msra.mxu0 0.0
        %384 = vmatprep.subr.mxu0 0.0
        %385 = vmatpush1.msra.mxu0 0.0
        %386 = vmatprep.subr.mxu0 0.0
        %387 = vmatpush1.msra.mxu0 0.0
        %388 = vmatprep.subr.mxu0 0.0
        %389 = vmatpush1.msra.mxu0 0.0
        %390 = vmatprep.subr.mxu0 0.0
        %391 = vmatpush1.msra.mxu0 0.0
        %392 = vmatprep.subr.mxu0 0.0
        %393 = vmatpush1.msra.mxu0 0.0
        %394 = vmatprep.subr.mxu0 0.0
        %395 = vmatpush1.msra.mxu0 0.0
        %396 = vmatprep.subr.mxu0 0.0
        %397 = vmatpush1.msra.mxu0 0.0
        %398 = vmatprep.subr.mxu0 0.0
        %399 = vmatpush1.msra.mxu0 0.0
        %400 = vmatprep.subr.mxu0 0.0
        %401 = vmatpush1.msra.mxu0 0.0
        %402 = vmatprep.subr.mxu0 0.0
        %403 = vmatpush1.msra.mxu0 0.0
        %404 = vmatprep.subr.mxu0 0.0
        %405 = vmatpush1.msra.mxu0 0.0
        %406 = vmatprep.subr.mxu0 0.0
        %407 = vmatpush1.msra.mxu0 0.0
        %408 = vmatprep.subr.mxu0 0.0
        %409 = vmatpush1.msra.mxu0 0.0
        %410 = vmatprep.subr.mxu0 0.0
        %411 = vmatpush1.msra.mxu0 0.0
        %412 = vmatprep.subr.mxu0 0.0
        %413 = vmatpush1.msra.mxu0 0.0
        %414 = vmatprep.subr.mxu0 0.0
        %415 = vmatpush1.msra.mxu0 0.0
        %416 = vmatprep.subr.mxu0 0.0
        %417 = vmatpush1.msra.mxu0 0.0
        %418 = vmatprep.subr.mxu0 0.0
        %419 = vmatpush1.msra.mxu0 0.0
        %420 = vmatprep.subr.mxu0 0.0
        %421 = vmatpush1.msra.mxu0 0.0
        %422 = vmatprep.subr.mxu0 0.0
        %423 = vmatpush1.msra.mxu0 0.0
        %424 = vmatprep.mubr.f32.mxu0 0.0
        %425 = vmatmul.mubr.f32.gmra.mrb[0].mxu0 %v358
        %v426 = vpop.f32.mrb[0].mxu0
        %v427 = vadd.f32 0.0, %v426
        %v428 = vpop.f32.mrb[0].mxu0
        %429 = vdwg.mxu0
        %v430 = vmul.f32 %v427, 1.442695
        %v431 = vpow.pop %v430
        %v432 = vsub.f32 %v431, 1.0
        %v433 = vmax.f32 %v432, 0.0
        %v434 = vld [vmem:[%s3] sm:$0xff]
        %v435 = vld [vmem:[%s3 + $0x8] sm:$0xff]
        %v436 = vld [vmem:[%s3 + $0x10] sm:$0xff]
        %v437 = vld [vmem:[%s3 + $0x18] sm:$0xff]
        %v438 = vld [vmem:[%s3 + $0x20] sm:$0xff]
        %v439 = vld [vmem:[%s3 + $0x28] sm:$0xff]
        %v440 = vld [vmem:[%s3 + $0x30] sm:$0xff]
        %v441 = vld [vmem:[%s3 + $0x38] sm:$0xff]
        %v442 = vld [vmem:[%s3 + $0x40] sm:$0xff]
        %v443 = vld [vmem:[%s3 + $0x48] sm:$0xff]
        %v444 = vld [vmem:[%s3 + $0x50] sm:$0xff]
        %v445 = vld [vmem:[%s3 + $0x58] sm:$0xff]
        %v446 = vld [vmem:[%s3 + $0x60] sm:$0xff]
        %v447 = vld [vmem:[%s3 + $0x68] sm:$0xff]
        %v448 = vld [vmem:[%s3 + $0x70] sm:$0xff]
        %v449 = vld [vmem:[%s3 + $0x78] sm:$0xff]
        %v450 = vld [vmem:[%s4] sm:$0x1]
        %v452 = vlaneseq
        %v453 = vshrl.u32 %v452, 7
        %v454 = vsub.s32 0, %v453
        %v455 = vrot.slane %v450, %v454
        %457 = vmatprep.subr.mxu0 0.0
        %458 = vmatpush1.msra.mxu0 %v434
        %459 = vmatprep.subr.mxu0 0.0
        %460 = vmatpush1.msra.mxu0 %v435
        %461 = vmatprep.subr.mxu0 0.0
        %462 = vmatpush1.msra.mxu0 %v436
        %463 = vmatprep.subr.mxu0 0.0
        %464 = vmatpush1.msra.mxu0 %v437
        %465 = vmatprep.subr.mxu0 0.0
        %466 = vmatpush1.msra.mxu0 %v438
        %467 = vmatprep.subr.mxu0 0.0
        %468 = vmatpush1.msra.mxu0 %v439
        %469 = vmatprep.subr.mxu0 0.0
        %470 = vmatpush1.msra.mxu0 %v440
        %471 = vmatprep.subr.mxu0 0.0
        %472 = vmatpush1.msra.mxu0 %v441
        %473 = vmatprep.subr.mxu0 0.0
        %474 = vmatpush1.msra.mxu0 %v442
        %475 = vmatprep.subr.mxu0 0.0
        %476 = vmatpush1.msra.mxu0 %v443
        %477 = vmatprep.subr.mxu0 0.0
        %478 = vmatpush1.msra.mxu0 %v444
        %479 = vmatprep.subr.mxu0 0.0
        %480 = vmatpush1.msra.mxu0 %v445
        %481 = vmatprep.subr.mxu0 0.0
        %482 = vmatpush1.msra.mxu0 %v446
        %483 = vmatprep.subr.mxu0 0.0
        %484 = vmatpush1.msra.mxu0 %v447
        %485 = vmatprep.subr.mxu0 0.0
        %486 = vmatpush1.msra.mxu0 %v448
        %487 = vmatprep.subr.mxu0 0.0
        %488 = vmatpush1.msra.mxu0 %v449
        %489 = vmatprep.subr.mxu0 0.0
        %490 = vmatpush1.msra.mxu0 0.0
        %491 = vmatprep.subr.mxu0 0.0
        %492 = vmatpush1.msra.mxu0 0.0
        %493 = vmatprep.subr.mxu0 0.0
        %494 = vmatpush1.msra.mxu0 0.0
        %495 = vmatprep.subr.mxu0 0.0
        %496 = vmatpush1.msra.mxu0 0.0
        %497 = vmatprep.subr.mxu0 0.0
        %498 = vmatpush1.msra.mxu0 0.0
        %499 = vmatprep.subr.mxu0 0.0
        %500 = vmatpush1.msra.mxu0 0.0
        %501 = vmatprep.subr.mxu0 0.0
        %502 = vmatpush1.msra.mxu0 0.0
        %503 = vmatprep.subr.mxu0 0.0
        %504 = vmatpush1.msra.mxu0 0.0
        %505 = vmatprep.subr.mxu0 0.0
        %506 = vmatpush1.msra.mxu0 0.0
        %507 = vmatprep.subr.mxu0 0.0
        %508 = vmatpush1.msra.mxu0 0.0
        %509 = vmatprep.subr.mxu0 0.0
        %510 = vmatpush1.msra.mxu0 0.0
        %511 = vmatprep.subr.mxu0 0.0
        %512 = vmatpush1.msra.mxu0 0.0
        %513 = vmatprep.subr.mxu0 0.0
        %514 = vmatpush1.msra.mxu0 0.0
        %515 = vmatprep.subr.mxu0 0.0
        %516 = vmatpush1.msra.mxu0 0.0
        %517 = vmatprep.subr.mxu0 0.0
        %518 = vmatpush1.msra.mxu0 0.0
        %519 = vmatprep.subr.mxu0 0.0
        %520 = vmatpush1.msra.mxu0 0.0
        %521 = vmatprep.mubr.f32.mxu0 0.0
        %522 = vmatmul.mubr.f32.gmra.mrb[0].mxu0 %v433
        %v523 = vpop.f32.mrb[0].mxu0
        %v524 = vadd.f32 %v455, %v523
        %v525 = vpop.f32.mrb[0].mxu0
        %526 = vdwg.mxu0
        %v527 = vmax.f32 %v524, 0.0
        %v528 = vld [vmem:[%s5] sm:$0xff]
        %v529 = vld [vmem:[%s5 + $0x8] sm:$0xff]
        %v530 = vld [vmem:[%s5 + $0x10] sm:$0xff]
        %v531 = vld [vmem:[%s5 + $0x18] sm:$0xff]
        %v532 = vld [vmem:[%s5 + $0x20] sm:$0xff]
        %v533 = vld [vmem:[%s5 + $0x28] sm:$0xff]
        %v534 = vld [vmem:[%s5 + $0x30] sm:$0xff]
        %v535 = vld [vmem:[%s5 + $0x38] sm:$0xff]
        %v536 = vld [vmem:[%s6] sm:$0x1]
        %v538 = vlaneseq
        %v539 = vshrl.u32 %v538, 7
        %v540 = vsub.s32 0, %v539
        %v541 = vrot.slane %v536, %v540
        %v544 = vsel %vm356, %v527, 0
        %546 = vmatprep.subr.mxu0 0.0
        %547 = vmatpush1.msra.mxu0 %v528
        %548 = vmatprep.subr.mxu0 0.0
        %549 = vmatpush1.msra.mxu0 %v529
        %550 = vmatprep.subr.mxu0 0.0
        %551 = vmatpush1.msra.mxu0 %v530
        %552 = vmatprep.subr.mxu0 0.0
        %553 = vmatpush1.msra.mxu0 %v531
        %554 = vmatprep.subr.mxu0 0.0
        %555 = vmatpush1.msra.mxu0 %v532
        %556 = vmatprep.subr.mxu0 0.0
        %557 = vmatpush1.msra.mxu0 %v533
        %558 = vmatprep.subr.mxu0 0.0
        %559 = vmatpush1.msra.mxu0 %v534
        %560 = vmatprep.subr.mxu0 0.0
        %561 = vmatpush1.msra.mxu0 %v535
        %562 = vmatprep.subr.mxu0 0.0
        %563 = vmatpush1.msra.mxu0 0.0
        %564 = vmatprep.subr.mxu0 0.0
        %565 = vmatpush1.msra.mxu0 0.0
        %566 = vmatprep.subr.mxu0 0.0
        %567 = vmatpush1.msra.mxu0 0.0
        %568 = vmatprep.subr.mxu0 0.0
        %569 = vmatpush1.msra.mxu0 0.0
        %570 = vmatprep.subr.mxu0 0.0
        %571 = vmatpush1.msra.mxu0 0.0
        %572 = vmatprep.subr.mxu0 0.0
        %573 = vmatpush1.msra.mxu0 0.0
        %574 = vmatprep.subr.mxu0 0.0
        %575 = vmatpush1.msra.mxu0 0.0
        %576 = vmatprep.subr.mxu0 0.0
        %577 = vmatpush1.msra.mxu0 0.0
        %578 = vmatprep.subr.mxu0 0.0
        %579 = vmatpush1.msra.mxu0 0.0
        %580 = vmatprep.subr.mxu0 0.0
        %581 = vmatpush1.msra.mxu0 0.0
        %582 = vmatprep.subr.mxu0 0.0
        %583 = vmatpush1.msra.mxu0 0.0
        %584 = vmatprep.subr.mxu0 0.0
        %585 = vmatpush1.msra.mxu0 0.0
        %586 = vmatprep.subr.mxu0 0.0
        %587 = vmatpush1.msra.mxu0 0.0
        %588 = vmatprep.subr.mxu0 0.0
        %589 = vmatpush1.msra.mxu0 0.0
        %590 = vmatprep.subr.mxu0 0.0
        %591 = vmatpush1.msra.mxu0 0.0
        %592 = vmatprep.subr.mxu0 0.0
        %593 = vmatpush1.msra.mxu0 0.0
        %594 = vmatprep.subr.mxu0 0.0
        %595 = vmatpush1.msra.mxu0 0.0
        %596 = vmatprep.subr.mxu0 0.0
        %597 = vmatpush1.msra.mxu0 0.0
        %598 = vmatprep.subr.mxu0 0.0
        %599 = vmatpush1.msra.mxu0 0.0
        %600 = vmatprep.subr.mxu0 0.0
        %601 = vmatpush1.msra.mxu0 0.0
        %602 = vmatprep.subr.mxu0 0.0
        %603 = vmatpush1.msra.mxu0 0.0
        %604 = vmatprep.subr.mxu0 0.0
        %605 = vmatpush1.msra.mxu0 0.0
        %606 = vmatprep.subr.mxu0 0.0
        %607 = vmatpush1.msra.mxu0 0.0
        %608 = vmatprep.subr.mxu0 0.0
        %609 = vmatpush1.msra.mxu0 0.0
        %610 = vmatprep.mubr.f32.mxu0 0.0
        %611 = vmatmul.mubr.f32.gmra.mrb[0].mxu0 %v544
        %v612 = vpop.f32.mrb[0].mxu0
        %v613 = vadd.f32 %v541, %v612
        %v614 = vpop.f32.mrb[0].mxu0
        %615 = vdwg.mxu0
        %v616 = vmax.f32 %v613, 0.0
        %v617 = vld [vmem:[%s7] sm:$0xff]
        %vm618 = vcmask 261120
        %v620 = vsel %vm618, %v617, 0
        %v623 = vsel %vm618, %v616, 0
        %625 = vmatprep.subr.mxu0 0.0
        %626 = vmatpush1.xpose.msra.mxu0 %v623
        %627 = vmatprep.subr.mxu0 0.0
        %628 = vmatpush1.xpose.msra.mxu0 0.0
        %629 = vmatprep.subr.mxu0 0.0
        %630 = vmatpush1.xpose.msra.mxu0 0.0
        %631 = vmatprep.subr.mxu0 0.0
        %632 = vmatpush1.xpose.msra.mxu0 0.0
        %633 = vmatprep.subr.mxu0 0.0
        %634 = vmatpush1.xpose.msra.mxu0 0.0
        %635 = vmatprep.subr.mxu0 0.0
        %636 = vmatpush1.xpose.msra.mxu0 0.0
        %637 = vmatprep.subr.mxu0 0.0
        %638 = vmatpush1.xpose.msra.mxu0 0.0
        %639 = vmatprep.subr.mxu0 0.0
        %640 = vmatpush1.xpose.msra.mxu0 0.0
        %641 = vmatprep.subr.mxu0 0.0
        %642 = vmatpush1.xpose.msra.mxu0 0.0
        %643 = vmatprep.subr.mxu0 0.0
        %644 = vmatpush1.xpose.msra.mxu0 0.0
        %645 = vmatprep.subr.mxu0 0.0
        %646 = vmatpush1.xpose.msra.mxu0 0.0
        %647 = vmatprep.subr.mxu0 0.0
        %648 = vmatpush1.xpose.msra.mxu0 0.0
        %649 = vmatprep.subr.mxu0 0.0
        %650 = vmatpush1.xpose.msra.mxu0 0.0
        %651 = vmatprep.subr.mxu0 0.0
        %652 = vmatpush1.xpose.msra.mxu0 0.0
        %653 = vmatprep.subr.mxu0 0.0
        %654 = vmatpush1.xpose.msra.mxu0 0.0
        %655 = vmatprep.subr.mxu0 0.0
        %656 = vmatpush1.xpose.msra.mxu0 0.0
        %657 = vmatprep.subr.mxu0 0.0
        %658 = vmatpush1.xpose.msra.mxu0 0.0
        %659 = vmatprep.subr.mxu0 0.0
        %660 = vmatpush1.xpose.msra.mxu0 0.0
        %661 = vmatprep.subr.mxu0 0.0
        %662 = vmatpush1.xpose.msra.mxu0 0.0
        %663 = vmatprep.subr.mxu0 0.0
        %664 = vmatpush1.xpose.msra.mxu0 0.0
        %665 = vmatprep.subr.mxu0 0.0
        %666 = vmatpush1.xpose.msra.mxu0 0.0
        %667 = vmatprep.subr.mxu0 0.0
        %668 = vmatpush1.xpose.msra.mxu0 0.0
        %669 = vmatprep.subr.mxu0 0.0
        %670 = vmatpush1.xpose.msra.mxu0 0.0
        %671 = vmatprep.subr.mxu0 0.0
        %672 = vmatpush1.xpose.msra.mxu0 0.0
        %673 = vmatprep.subr.mxu0 0.0
        %674 = vmatpush1.xpose.msra.mxu0 0.0
        %675 = vmatprep.subr.mxu0 0.0
        %676 = vmatpush1.xpose.msra.mxu0 0.0
        %677 = vmatprep.subr.mxu0 0.0
        %678 = vmatpush1.xpose.msra.mxu0 0.0
        %679 = vmatprep.subr.mxu0 0.0
        %680 = vmatpush1.xpose.msra.mxu0 0.0
        %681 = vmatprep.subr.mxu0 0.0
        %682 = vmatpush1.xpose.msra.mxu0 0.0
        %683 = vmatprep.subr.mxu0 0.0
        %684 = vmatpush1.xpose.msra.mxu0 0.0
        %685 = vmatprep.subr.mxu0 0.0
        %686 = vmatpush1.xpose.msra.mxu0 0.0
        %687 = vmatprep.subr.mxu0 0.0
        %688 = vmatpush1.xpose.msra.mxu0 0.0
        %689 = vmatprep.mubr.f32.mxu0 0.0
        %690 = vmatmul.mubr.f32.gmra.mrb[0].mxu0 %v620
        %v691 = vpop.f32.mrb[0].mxu0
        %v692 = vadd.f32 0.0, %v691
        %v693 = vpop.f32.mrb[0].mxu0
        %694 = vdwg.mxu0
        %v695 = vld [vmem:[#allocation2] sm:$0x1]
        %697 = vset.pattern.permute.xlu0 0
        %698 = vperm.xlu0 %697, %v695
        %v699 = vpop.permute.xlu0 %698
        %v701 = vlaneseq
        %v702 = vshrl.u32 %v701, 7
        %v703 = vsub.s32 0, %v702
        %v704 = vrot.slane %v699, %v703
        %v705 = vadd.f32 %v692, %v704
        %v706 = vld [vmem:[%s342] sm:$0x1]
        %v707 = vadd.f32 %v705, %v706
        %v708 = vxor.u32 %v707, 2147483648
        %v709 = vmul.f32 %v708, 1.442695
        %v710 = vpow.pop %v709
        %v711 = vadd.f32 %v710, 1.0
        %v712 = vrcp.pop %v711
        %v713 = vmul.f32 1.0, %v712
        %vm714 = vcmask 57344
        %715 = vst.msk [vmem:[%s335] sm:$0x1] %vm714, %v713
        %s716 = sand.u32 %s232, 1
        %s717 = scalar_lea.sflag [#allocation4], %s716
        %s718 = sand.u32 %s232, 1
        %s719 = scalar_lea.vmem [#allocation3], %s718
        // Predicated region
        $region57: #{tpu_custom_call.1} parent=55 // pred_check
          %p720 = pneg %p242
        $region58: #{tpu_custom_call.1} parent=55 // pred_check_branch
          %722 = sbr.rel (%p720) target = $region60
        $region59: #{tpu_custom_call.1} parent=55 // pred_region
          %s724 = ssub.s32 16, 16
          %725 = vsyncadd %s717, %s724
          %s726 = smul.addr %s25, 16
          %s727 = scalar_lea.hbm %s9, %s726
          %s729 = sshll.u32 %s719, 4
          %s730 = int_to_ptr.vmem [resolvable:$true] %s729
          %732 = dma.vmem_to_hbm [thread:$0]  %s730, 16, %s727, %s717
        $region60: #{tpu_custom_call.1} parent=55 // pred_fallthru
          _
      $region56: #{tpu_custom_call.1} parent=5 // pred_fallthru
        _
      %p733 = scmp.le.s32.totalorder 2, %s20
      // Predicated region
      $region61: #{tpu_custom_call.1} parent=5 // pred_check
        %p734 = pneg %p733
      $region62: #{tpu_custom_call.1} parent=5 // pred_check_branch
        %736 = sbr.rel (%p734) target = $region64
      $region63: #{tpu_custom_call.1} parent=5 // pred_region
        %s737 = ssub.s32 %s20, 2
        // Predicated region
        $region65: #{tpu_custom_call.1} parent=63 // pred_check
          %p738 = pneg %p248
        $region66: #{tpu_custom_call.1} parent=63 // pred_check_branch
          %740 = sbr.rel (%p738) target = $region68
        $region67: #{tpu_custom_call.1} parent=63 // pred_region
          %s741 = sand.u32 %s233, 1
          %s742 = scalar_lea.sflag [#allocation4], %s741
          %s743 = sand.u32 %s233, 1
          %s744 = scalar_lea.vmem [#allocation3], %s743
          %745 = dma.done %s742, 16
        $region68: #{tpu_custom_call.1} parent=63 // pred_fallthru
          _
      $region64: #{tpu_custom_call.1} parent=5 // pred_fallthru
        _
    $region6: #{tpu_custom_call.1} parent=1 // loop_footer
      %s24 = sadd.s32 1, %s20
    $region7: #{tpu_custom_call.1} parent=1 // loop_footer_branch
      %19 = sbr.rel target = $region3
    $region8: #{tpu_custom_call.1} parent=1 // loop_exit
      _
    %746 = vsyncpa [#allocation4], 1
    %s747 = scalar_lea.sflag [#allocation4], 1
    %748 = vsyncpa %s747, 1

</llo_original>
